<compile_context>
chip_gen: v7x
topology: tpu7x:2x2x1
jax: 0.10.0
libtpu: 0.0.40
codegen_flags: <defaults>
</compile_context>

<pallas_src>
import functools

import jax
import jax.numpy as jnp
from jax.experimental import pallas as pl
from jax.experimental.pallas import tpu as pltpu

_LANE = 128
_T_CHUNK = 512  # lanes of x reduced / scaled per in-kernel chunk


def _budgets():
    """(vmem_limit_bytes, per-x-block budget). Block budget assumes the real
    VMEM peak is ~4x the block (2x double-buffered input + 2x output) + weights."""
    vmem_cap = None
    try:
        vmem_cap = getattr(pltpu.get_tpu_info(), "vmem_capacity_bytes", None)
    except Exception:  # pragma: no cover - e.g. interpret mode / no TPU info
        vmem_cap = None
    if vmem_cap is not None and vmem_cap >= 100 * 1024 * 1024:
        # v5e / v6e: 128 MiB physical VMEM. Big blocks keep more shapes fused
        # (2 HBM passes of x instead of 3) and amortize per-grid-step overhead.
        return 100 * 1024 * 1024, 24 * 1024 * 1024
    # v7x (64 MiB) or unknown: leave headroom for internal scratch. 8 MiB blocks
    # (4x = 32 MiB of double buffers) are safe now that the reduce is chunked.
    return 56 * 1024 * 1024, 8 * 1024 * 1024


def _excite(s, w1t_ref, b1_ref, w2t_ref, b2_ref):
    """s: (Bt, C) f32 pooled means -> sigmoid gate (Bt, C) f32 (1x1 convs as matmuls)."""
    h = jnp.dot(s, w1t_ref[...], preferred_element_type=jnp.float32) + b1_ref[...]
    h = jnp.maximum(h, 0.0)
    g = jnp.dot(h, w2t_ref[...], preferred_element_type=jnp.float32) + b2_ref[...]
    return jax.nn.sigmoid(g)


def _chunked_sum_f32(x_ref, t_extent, t_chunk):
    """Sum x_ref (Bt, C, t_extent) over the last axis, upcasting only one chunk
    at a time to f32 (avoids a full-tile f32 temporary)."""
    bt, c = x_ref.shape[0], x_ref.shape[1]
    acc = jnp.zeros((bt, c), jnp.float32)
    for start in range(0, t_extent, t_chunk):
        size = min(t_chunk, t_extent - start)
        acc = acc + jnp.sum(
            x_ref[:, :, start:start + size].astype(jnp.float32), axis=-1
        )
    return acc


# --------------------------------------------------------------------- fused path
def _se_fused_kernel(x_ref, w1t_ref, b1_ref, w2t_ref, b2_ref, o_ref, *, inv_t, t_chunk):
    bt, c, t = x_ref.shape
    s = _chunked_sum_f32(x_ref, t, t_chunk) * inv_t          # (Bt, C) f32
    g = _excite(s, w1t_ref, b1_ref, w2t_ref, b2_ref)          # (Bt, C) f32
    gx = g.astype(o_ref.dtype)[:, :, None]                    # cast once, native dtype
    for start in range(0, t, t_chunk):                        # chunked scale: no full-tile temp
        size = min(t_chunk, t - start)
        o_ref[:, :, start:start + size] = (
            x_ref[:, :, start:start + size] * gx
        ).astype(o_ref.dtype)


# --------------------------------------------------------------------- split path
def _se_pool_kernel(x_ref, w1t_ref, b1_ref, w2t_ref, b2_ref, g_ref, acc_ref, *, inv_t, t_chunk):
    ti = pl.program_id(1)

    @pl.when(ti == 0)
    def _():
        acc_ref[...] = jnp.zeros_like(acc_ref)

    tt = x_ref.shape[2]
    acc_ref[...] += _chunked_sum_f32(x_ref, tt, t_chunk)       # (Bt, C) f32

    @pl.when(ti == pl.num_programs(1) - 1)
    def _():
        g = _excite(acc_ref[...] * inv_t, w1t_ref, b1_ref, w2t_ref, b2_ref)
        g_ref[...] = g.astype(g_ref.dtype)[:, :, None]          # (Bt, C, 1) in x.dtype


def _se_scale_kernel(g_ref, x_ref, o_ref):
    # Pure HBM streaming: one vld + one vmul + one vst per vreg, no converts.
    o_ref[...] = (x_ref[...] * g_ref[...]).astype(o_ref.dtype)


# --------------------------------------------------------------------- tiling helpers
def _batch_tile(batch, bytes_per_elem, budget, *, keep_two_programs=True):
    """Largest divisor of `batch` whose x block stays under `budget` bytes, capped
    so the batch grid axis has >= 2 programs (both v7x TensorCores busy)."""
    bt = max(1, min(batch, budget // max(bytes_per_elem, 1)))
    if keep_two_programs and batch >= 2:
        bt = min(bt, batch // 2)
    bt = max(1, bt)
    while batch % bt != 0:
        bt -= 1
    return bt


def _time_tile(t, bytes_per_step, budget):
    """Largest multiple of 128 dividing `t` (t already a multiple of 128) that
    fits in `budget`; never below 128."""
    max_tt = max(_LANE, (budget // max(bytes_per_step, 1)) // _LANE * _LANE)
    tt = min(t, max_tt)
    while t % tt != 0:
        tt -= _LANE
    return tt


def _weight_specs(C, Cr, index_map):
    return [
        pl.BlockSpec((C, Cr), index_map),   # W1^T
        pl.BlockSpec((1, Cr), index_map),   # b1 row
        pl.BlockSpec((Cr, C), index_map),   # W2^T
        pl.BlockSpec((1, C), index_map),    # b2 row
    ]


# --------------------------------------------------------------------- wrapper
def se_module(x, w1, b1, w2, b2, *, max_block_bytes=None, vmem_limit_bytes=None):
    """x: (B, C, T); w1: (Cr, C); b1: (Cr,)|(Cr,1); w2: (C, Cr); b2: (C,)|(C,1)."""
    B, C, T = x.shape
    Cr = w1.shape[0]
    itemsize = x.dtype.itemsize

    default_vmem, default_block = _budgets()
    vmem_limit_bytes = default_vmem if vmem_limit_bytes is None else vmem_limit_bytes
    max_block_bytes = default_block if max_block_bytes is None else max_block_bytes

    # 1x1-conv weights as (in, out) for right-multiplication; biases as row vectors.
    f32 = jnp.float32
    w1t = w1.astype(f32).reshape(Cr, C).T        # (C, Cr)
    w2t = w2.astype(f32).reshape(C, Cr).T        # (Cr, C)
    b1r = b1.astype(f32).reshape(1, Cr)
    b2r = b2.astype(f32).reshape(1, C)

    compiler = functools.partial(pltpu.CompilerParams, vmem_limit_bytes=vmem_limit_bytes)

    slab_bytes = C * T * itemsize

    if slab_bytes <= max_block_bytes:
        # ---- fused: whole (C, T) slab per element is VMEM-resident.
        bt = _batch_tile(B, slab_bytes, max_block_bytes)
        kernel = functools.partial(_se_fused_kernel, inv_t=1.0 / T, t_chunk=_T_CHUNK)
        return pl.pallas_call(
            kernel,
            out_shape=jax.ShapeDtypeStruct((B, C, T), x.dtype),
            grid_spec=pltpu.PrefetchScalarGridSpec(
                num_scalar_prefetch=0,
                grid=(B // bt,),
                in_specs=[pl.BlockSpec((bt, C, T), lambda bi: (bi, 0, 0))]
                + _weight_specs(C, Cr, lambda bi: (0, 0)),
                out_specs=pl.BlockSpec((bt, C, T), lambda bi: (bi, 0, 0)),
            ),
            compiler_params=compiler(dimension_semantics=("parallel",)),
            cost_estimate=pl.CostEstimate(
                flops=2 * B * C * T + 4 * B * C * Cr,
                transcendentals=B * C,
                bytes_accessed=2 * B * C * T * itemsize,
            ),
        )(x, w1t, b1r, w2t, b2r)

    # ---- split: (1) pool+excite -> gate (B, C, 1), (2) lane-dense scale tiled over T.
    # T is padded up to a multiple of 128 (zeros contribute 0 to the pooled sum;
    # we still divide by the true T), keeping the efficient tiling instead of a
    # VMEM-blowing full-slab fallback.
    t_pad = -(-T // _LANE) * _LANE
    xp = x if t_pad == T else jnp.pad(x, ((0, 0), (0, 0), (0, t_pad - T)))

    tt = _time_tile(t_pad, C * itemsize, max_block_bytes)
    bt = _batch_tile(B, C * tt * itemsize, max_block_bytes)
    grid = (B // bt, t_pad // tt)

    pool = functools.partial(_se_pool_kernel, inv_t=1.0 / T, t_chunk=_T_CHUNK)
    g = pl.pallas_call(
        pool,
        out_shape=jax.ShapeDtypeStruct((B, C, 1), x.dtype),
        grid_spec=pltpu.PrefetchScalarGridSpec(
            num_scalar_prefetch=0,
            grid=grid,
            in_specs=[pl.BlockSpec((bt, C, tt), lambda bi, ti: (bi, 0, ti))]
            + _weight_specs(C, Cr, lambda bi, ti: (0, 0)),
            out_specs=pl.BlockSpec((bt, C, 1), lambda bi, ti: (bi, 0, 0)),
            scratch_shapes=[pltpu.VMEM((bt, C), jnp.float32)],
        ),
        compiler_params=compiler(dimension_semantics=("parallel", "arbitrary")),
        cost_estimate=pl.CostEstimate(
            flops=B * C * T + 4 * B * C * Cr,
            transcendentals=B * C,
            bytes_accessed=B * C * T * itemsize + B * C * itemsize,
        ),
    )(xp, w1t, b1r, w2t, b2r)

    out = pl.pallas_call(
        _se_scale_kernel,
        out_shape=jax.ShapeDtypeStruct((B, C, t_pad), x.dtype),
        grid_spec=pltpu.PrefetchScalarGridSpec(
            num_scalar_prefetch=0,
            grid=grid,
            in_specs=[
                pl.BlockSpec((bt, C, 1), lambda bi, ti: (bi, 0, 0)),
                pl.BlockSpec((bt, C, tt), lambda bi, ti: (bi, 0, ti)),
            ],
            out_specs=pl.BlockSpec((bt, C, tt), lambda bi, ti: (bi, 0, ti)),
        ),
        compiler_params=compiler(dimension_semantics=("parallel", "parallel")),
        cost_estimate=pl.CostEstimate(
            flops=B * C * T,
            transcendentals=0,
            bytes_accessed=2 * B * C * T * itemsize + B * C * itemsize,
        ),
    )(g, xp)

    return out if t_pad == T else out[:, :, :T]


# --------------------------------------------------------------------- reference
def se_reference(x, w1, b1, w2, b2):
    xf = x.astype(jnp.float32)
    s = jnp.mean(xf, axis=2, keepdims=True)                                  # (B, C, 1)
    h = jnp.einsum("rc,bco->bro", w1.astype(jnp.float32), s) + b1.reshape(1, -1, 1)
    h = jnp.maximum(h, 0.0)
    g = jnp.einsum("cr,bro->bco", w2.astype(jnp.float32), h) + b2.reshape(1, -1, 1)
    g = jax.nn.sigmoid(g)
    return (xf * g).astype(x.dtype)


if __name__ == "__main__":
    SE_ratio = 8

    def run_case(B, C, T, **kwargs):
        Cr = C // SE_ratio
        key = jax.random.PRNGKey(0)
        kx, k1, k2, k3, k4 = jax.random.split(key, 5)
        x = jax.random.normal(kx, (B, C, T), dtype=jnp.float32)
        # Conv1d(k=1) weights: (out, in). Biases stored as column vectors (out, 1).
        w1 = jax.random.normal(k1, (Cr, C), dtype=jnp.float32) * 0.1
        b1 = jax.random.normal(k2, (Cr, 1), dtype=jnp.float32) * 0.1
        w2 = jax.random.normal(k3, (C, Cr), dtype=jnp.float32) * 0.1
        b2 = jax.random.normal(k4, (C, 1), dtype=jnp.float32) * 0.1

        out = jax.block_until_ready(se_module(x, w1, b1, w2, b2, **kwargs))
        ref = se_reference(x, w1, b1, w2, b2)
        assert out.shape == (B, C, T)
        assert jnp.allclose(out, ref, atol=1e-5, rtol=1e-5), f"mismatch at B={B},C={C},T={T}"

    # Fused path (small demo shape implied by the module).
    run_case(2, 32, 16)
    # Split pool+scale path (tiny block budget forces T tiling; exercises both kernels).
    run_case(4, 32, 256, max_block_bytes=16 * 1024)
    # Split path with T not a multiple of 128 (exercises the pad-and-slice path).
    run_case(2, 32, 200, max_block_bytes=8 * 1024)

    print("KERNEL_OK")
</pallas_src>

<mosaic_0001>
module attributes {stable_mosaic.version = 11 : i64} {
  func.func @_se_fused_kernel(%arg0: i32, %arg1: memref<1x32x16xf32, #tpu.memory_space<vmem>>, %arg2: memref<32x4xf32, #tpu.memory_space<vmem>>, %arg3: memref<1x4xf32, #tpu.memory_space<vmem>>, %arg4: memref<4x32xf32, #tpu.memory_space<vmem>>, %arg5: memref<1x32xf32, #tpu.memory_space<vmem>>, %arg6: memref<1x32x16xf32, #tpu.memory_space<vmem>>) attributes {dimension_semantics = [#tpu.dimension_semantics<parallel>], iteration_bounds = array<i64: 2>, scalar_prefetch = 0 : i64, scratch_operands = 0 : i64, tpu.core_type = #tpu.core_type<tc>, window_params = [{transform_indices = @transform_0, window_bounds = array<i64: 1, 32, 16>}, {pipeline_mode = #tpu.pipeline_mode<synchronous>, transform_indices = @transform_1, window_bounds = array<i64: 32, 4>}, {pipeline_mode = #tpu.pipeline_mode<synchronous>, transform_indices = @transform_2, window_bounds = array<i64: 1, 4>}, {pipeline_mode = #tpu.pipeline_mode<synchronous>, transform_indices = @transform_3, window_bounds = array<i64: 4, 32>}, {pipeline_mode = #tpu.pipeline_mode<synchronous>, transform_indices = @transform_4, window_bounds = array<i64: 1, 32>}, {transform_indices = @transform_5, window_bounds = array<i64: 1, 32, 16>}]} {
    %cst = arith.constant 0.000000e+00 : f32
    %0 = vector.broadcast %cst : f32 to vector<1x32xf32>
    %c0 = arith.constant 0 : index
    %c0_0 = arith.constant 0 : index
    %c0_1 = arith.constant 0 : index
    %1 = vector.load %arg1[%c0, %c0_0, %c0_1] : memref<1x32x16xf32, #tpu.memory_space<vmem>>, vector<1x32x16xf32>
    %cst_2 = arith.constant dense<0.000000e+00> : vector<1x32xf32>
    %2 = vector.multi_reduction <add>, %1, %cst_2 [2] : vector<1x32x16xf32> to vector<1x32xf32>
    %3 = arith.addf %0, %2 : vector<1x32xf32>
    %cst_3 = arith.constant 6.250000e-02 : f32
    %4 = vector.broadcast %cst_3 : f32 to vector<1x32xf32>
    %5 = arith.mulf %3, %4 : vector<1x32xf32>
    %c0_4 = arith.constant 0 : index
    %c0_5 = arith.constant 0 : index
    %6 = vector.load %arg2[%c0_4, %c0_5] : memref<32x4xf32, #tpu.memory_space<vmem>>, vector<32x4xf32>
    %cst_6 = arith.constant dense<0.000000e+00> : vector<1x4xf32>
    %7 = tpu.matmul %5, %6, %cst_6 {dimension_numbers = #tpu.dot_dimension_numbers<[1], [0], [0], [1], [0, 0, 1, 1], [], []>} : vector<1x32xf32>, vector<32x4xf32>, vector<1x4xf32> -> vector<1x4xf32>
    %c0_7 = arith.constant 0 : index
    %c0_8 = arith.constant 0 : index
    %8 = vector.load %arg3[%c0_7, %c0_8] : memref<1x4xf32, #tpu.memory_space<vmem>>, vector<1x4xf32>
    %9 = arith.addf %7, %8 : vector<1x4xf32>
    %cst_9 = arith.constant 0.000000e+00 : f32
    %10 = vector.broadcast %cst_9 : f32 to vector<1x4xf32>
    %11 = arith.maximumf %9, %10 : vector<1x4xf32>
    %c0_10 = arith.constant 0 : index
    %c0_11 = arith.constant 0 : index
    %12 = vector.load %arg4[%c0_10, %c0_11] : memref<4x32xf32, #tpu.memory_space<vmem>>, vector<4x32xf32>
    %cst_12 = arith.constant dense<0.000000e+00> : vector<1x32xf32>
    %13 = tpu.matmul %11, %12, %cst_12 {dimension_numbers = #tpu.dot_dimension_numbers<[1], [0], [0], [1], [0, 0, 1, 1], [], []>} : vector<1x4xf32>, vector<4x32xf32>, vector<1x32xf32> -> vector<1x32xf32>
    %c0_13 = arith.constant 0 : index
    %c0_14 = arith.constant 0 : index
    %14 = vector.load %arg5[%c0_13, %c0_14] : memref<1x32xf32, #tpu.memory_space<vmem>>, vector<1x32xf32>
    %15 = arith.addf %13, %14 : vector<1x32xf32>
    %16 = arith.negf %15 : vector<1x32xf32>
    %17 = math.exp %16 : vector<1x32xf32>
    %cst_15 = arith.constant 1.000000e+00 : f32
    %18 = vector.broadcast %cst_15 : f32 to vector<1x32xf32>
    %19 = arith.addf %18, %17 : vector<1x32xf32>
    %20 = arith.divf %18, %19 : vector<1x32xf32>
    %21 = vector.shape_cast %20 : vector<1x32xf32> to vector<1x32x1xf32>
    %c0_16 = arith.constant 0 : index
    %c0_17 = arith.constant 0 : index
    %c0_18 = arith.constant 0 : index
    %22 = vector.load %arg1[%c0_16, %c0_17, %c0_18] : memref<1x32x16xf32, #tpu.memory_space<vmem>>, vector<1x32x16xf32>
    %23 = vector.broadcast %21 : vector<1x32x1xf32> to vector<1x32x16xf32>
    %24 = arith.mulf %22, %23 : vector<1x32x16xf32>
    %c0_19 = arith.constant 0 : index
    %c0_20 = arith.constant 0 : index
    %c0_21 = arith.constant 0 : index
    %25 = vector.load %arg6[%c0_19, %c0_20, %c0_21] : memref<1x32x16xf32, #tpu.memory_space<vmem>>, vector<1x32x16xf32>
    tpu.vector_store %arg6[%c0_19, %c0_20, %c0_21], %24 {strides = array<i32>} : memref<1x32x16xf32, #tpu.memory_space<vmem>>, vector<1x32x16xf32>,
    return
  }
  func.func @transform_0(%arg0: i32) -> (i32, i32, i32) {
    %c0_i32 = arith.constant 0 : i32
    %c0_i32_0 = arith.constant 0 : i32
    %c0_i32_1 = arith.constant 0 : i32
    return %arg0, %c0_i32, %c0_i32_0 : i32, i32, i32
  }
  func.func @transform_1(%arg0: i32) -> (i32, i32) {
    %c0_i32 = arith.constant 0 : i32
    %c0_i32_0 = arith.constant 0 : i32
    %c0_i32_1 = arith.constant 0 : i32
    return %c0_i32, %c0_i32_0 : i32, i32
  }
  func.func @transform_2(%arg0: i32) -> (i32, i32) {
    %c0_i32 = arith.constant 0 : i32
    %c0_i32_0 = arith.constant 0 : i32
    %c0_i32_1 = arith.constant 0 : i32
    return %c0_i32, %c0_i32_0 : i32, i32
  }
  func.func @transform_3(%arg0: i32) -> (i32, i32) {
    %c0_i32 = arith.constant 0 : i32
    %c0_i32_0 = arith.constant 0 : i32
    %c0_i32_1 = arith.constant 0 : i32
    return %c0_i32, %c0_i32_0 : i32, i32
  }
  func.func @transform_4(%arg0: i32) -> (i32, i32) {
    %c0_i32 = arith.constant 0 : i32
    %c0_i32_0 = arith.constant 0 : i32
    %c0_i32_1 = arith.constant 0 : i32
    return %c0_i32, %c0_i32_0 : i32, i32
  }
  func.func @transform_5(%arg0: i32) -> (i32, i32, i32) {
    %c0_i32 = arith.constant 0 : i32
    %c0_i32_0 = arith.constant 0 : i32
    %c0_i32_1 = arith.constant 0 : i32
    return %arg0, %c0_i32, %c0_i32_0 : i32, i32, i32
  }
}

</mosaic_0001>

<llo_original>
// kernel: tpu_custom_call.1
$region0: #{tpu_custom_call.1}
  #allocation0 [shape = 'u32[]', space=smem, size = 0x4, offset = 0x4, fixed_abs, tag = 'smem constant byte address 0x4 - core index']
  #allocation1 [shape = 'u32[144,128]{1,0:T(1,128)}', space=vmem, size = 0x12000, scoped, tag = 'internal scratch']
  %s0 = inlined_call_operand.vmem [shape: f32[2,32,16], index: 0, kind: input, shape index: {}]
  %s1 = inlined_call_operand.vmem [shape: f32[32,4], index: 1, kind: input, shape index: {}]
  %s2 = inlined_call_operand.vmem [shape: f32[1,4], index: 2, kind: input, shape index: {}]
  %s3 = inlined_call_operand.vmem [shape: f32[4,32], index: 3, kind: input, shape index: {}]
  %s4 = inlined_call_operand.vmem [shape: f32[1,32], index: 4, kind: input, shape index: {}]
  %s5 = inlined_call_operand.vmem [shape: f32[2,32,16], index: 5, kind: output, shape index: {}]
  %s6 = sld [smem:[#allocation0]]
  $region53: #{tpu_custom_call.1} parent=0
    _
  %s8 = ssub.s32 1, %s6
  %s9 = scalar_select 0, %s8, %s6
  loop: start=0, step=1, limit=4
  $region2: #{tpu_custom_call.1} parent=0 // loop_pre_header
    _
  $region3: #{tpu_custom_call.1} parent=0 // loop_header
    %s11 = sphi 0, %s15
    %p12 = scmp.ge.s32.totalorder %s11, 4
    %s21 = sphi 0, %s23
    %s24 = sphi 0, %s21
    %s25 = sphi 0, %s24
    %s41 = sphi 0, %s25
    %s45 = sphi 0, %s45
    %s47 = sphi 0, %s45
    %s48 = sphi 0, %s47
    %s62 = sphi 0, %s48
    %s66 = sphi 0, %s66
    %s68 = sphi 0, %s66
    %s69 = sphi 0, %s68
    %s83 = sphi 0, %s69
    %s87 = sphi 0, %s87
    %s89 = sphi 0, %s87
    %s90 = sphi 0, %s89
    %s104 = sphi 0, %s90
    %s108 = sphi 0, %s108
    %s110 = sphi 0, %s108
    %s111 = sphi 0, %s110
    %s125 = sphi 0, %s111
    %s131 = sphi 0, %s133
    %s134 = sphi 0, %s131
    %s135 = sphi 0, %s134
    %s151 = sphi 0, %s135
  $region4: #{tpu_custom_call.1} parent=0 // loop_header_branch
    %14 = sbr.rel (%p12) target = $region8
  $region5: #{tpu_custom_call.1} parent=0 // loop_body
    %s16 = ssub.s32 %s11, 1
    %s17 = ssub.s32 %s11, 2
    %s18 = sadd.s32 %s11, 1
    %s19 = ssub.s32 %s11, %s18
    %p20 = scmp.eq.s32.totalorder %s19, 0
    %s22 = sadd.s32 %s21, 1
    %s23 = scalar_select %p20, %s21, %s22
    %p26 = pneg %p20
    %p27 = scmp.eq.s32.totalorder %s11, 1
    %p28 = por %p26, %p27
    %p29 = scmp.ne.s32.totalorder %s21, %s24
    %p30 = scmp.eq.s32.totalorder %s11, 0
    %p31 = por %p29, %p30
    %p32 = scmp.ne.s32.totalorder %s21, %s24
    %p33 = scmp.eq.s32.totalorder %s16, 1
    %p34 = por %p32, %p33
    %p35 = scmp.ne.s32.totalorder %s24, %s25
    %p36 = scmp.eq.s32.totalorder %s16, 0
    %p37 = por %p35, %p36
    %p38 = scmp.ne.s32.totalorder %s24, %s25
    %p39 = scmp.eq.s32.totalorder %s17, 1
    %p40 = por %p38, %p39
    %p42 = scmp.ne.s32.totalorder %s25, %s41
    %p43 = scmp.eq.s32.totalorder %s17, 0
    %p44 = por %p42, %p43
    %s46 = sadd.s32 %s45, 1
    %p49 = scmp.eq.s32.totalorder %s11, 1
    %p50 = scmp.ne.s32.totalorder %s45, %s47
    %p51 = scmp.eq.s32.totalorder %s11, 0
    %p52 = por %p50, %p51
    %p53 = scmp.ne.s32.totalorder %s45, %s47
    %p54 = scmp.eq.s32.totalorder %s16, 1
    %p55 = por %p53, %p54
    %p56 = scmp.ne.s32.totalorder %s47, %s48
    %p57 = scmp.eq.s32.totalorder %s16, 0
    %p58 = por %p56, %p57
    %p59 = scmp.ne.s32.totalorder %s47, %s48
    %p60 = scmp.eq.s32.totalorder %s17, 1
    %p61 = por %p59, %p60
    %p63 = scmp.ne.s32.totalorder %s48, %s62
    %p64 = scmp.eq.s32.totalorder %s17, 0
    %p65 = por %p63, %p64
    %s67 = sadd.s32 %s66, 1
    %p70 = scmp.eq.s32.totalorder %s11, 1
    %p71 = scmp.ne.s32.totalorder %s66, %s68
    %p72 = scmp.eq.s32.totalorder %s11, 0
    %p73 = por %p71, %p72
    %p74 = scmp.ne.s32.totalorder %s66, %s68
    %p75 = scmp.eq.s32.totalorder %s16, 1
    %p76 = por %p74, %p75
    %p77 = scmp.ne.s32.totalorder %s68, %s69
    %p78 = scmp.eq.s32.totalorder %s16, 0
    %p79 = por %p77, %p78
    %p80 = scmp.ne.s32.totalorder %s68, %s69
    %p81 = scmp.eq.s32.totalorder %s17, 1
    %p82 = por %p80, %p81
    %p84 = scmp.ne.s32.totalorder %s69, %s83
    %p85 = scmp.eq.s32.totalorder %s17, 0
    %p86 = por %p84, %p85
    %s88 = sadd.s32 %s87, 1
    %p91 = scmp.eq.s32.totalorder %s11, 1
    %p92 = scmp.ne.s32.totalorder %s87, %s89
    %p93 = scmp.eq.s32.totalorder %s11, 0
    %p94 = por %p92, %p93
    %p95 = scmp.ne.s32.totalorder %s87, %s89
    %p96 = scmp.eq.s32.totalorder %s16, 1
    %p97 = por %p95, %p96
    %p98 = scmp.ne.s32.totalorder %s89, %s90
    %p99 = scmp.eq.s32.totalorder %s16, 0
    %p100 = por %p98, %p99
    %p101 = scmp.ne.s32.totalorder %s89, %s90
    %p102 = scmp.eq.s32.totalorder %s17, 1
    %p103 = por %p101, %p102
    %p105 = scmp.ne.s32.totalorder %s90, %s104
    %p106 = scmp.eq.s32.totalorder %s17, 0
    %p107 = por %p105, %p106
    %s109 = sadd.s32 %s108, 1
    %p112 = scmp.eq.s32.totalorder %s11, 1
    %p113 = scmp.ne.s32.totalorder %s108, %s110
    %p114 = scmp.eq.s32.totalorder %s11, 0
    %p115 = por %p113, %p114
    %p116 = scmp.ne.s32.totalorder %s108, %s110
    %p117 = scmp.eq.s32.totalorder %s16, 1
    %p118 = por %p116, %p117
    %p119 = scmp.ne.s32.totalorder %s110, %s111
    %p120 = scmp.eq.s32.totalorder %s16, 0
    %p121 = por %p119, %p120
    %p122 = scmp.ne.s32.totalorder %s110, %s111
    %p123 = scmp.eq.s32.totalorder %s17, 1
    %p124 = por %p122, %p123
    %p126 = scmp.ne.s32.totalorder %s111, %s125
    %p127 = scmp.eq.s32.totalorder %s17, 0
    %p128 = por %p126, %p127
    %s129 = ssub.s32 %s11, %s18
    %p130 = scmp.eq.s32.totalorder %s129, 0
    %s132 = sadd.s32 %s131, 1
    %s133 = scalar_select %p130, %s131, %s132
    %p136 = pneg %p130
    %p137 = scmp.eq.s32.totalorder %s11, 1
    %p138 = por %p136, %p137
    %p139 = scmp.ne.s32.totalorder %s131, %s134
    %p140 = scmp.eq.s32.totalorder %s11, 0
    %p141 = por %p139, %p140
    %p142 = scmp.ne.s32.totalorder %s131, %s134
    %p143 = scmp.eq.s32.totalorder %s16, 1
    %p144 = por %p142, %p143
    %p145 = scmp.ne.s32.totalorder %s134, %s135
    %p146 = scmp.eq.s32.totalorder %s16, 0
    %p147 = por %p145, %p146
    %p148 = scmp.ne.s32.totalorder %s134, %s135
    %p149 = scmp.eq.s32.totalorder %s17, 1
    %p150 = por %p148, %p149
    %p152 = scmp.ne.s32.totalorder %s135, %s151
    %p153 = scmp.eq.s32.totalorder %s17, 0
    %p154 = por %p152, %p153
    %p155 = scmp.le.s32.totalorder 1, %s11
    %p156 = scmp.lt.s32.totalorder %s11, 3
    %p157 = pnand %p155, %p156
    %p158 = pneg %p157
    // Predicated region
    $region9: #{tpu_custom_call.1} parent=5 // pred_check
      _
    $region10: #{tpu_custom_call.1} parent=5 // pred_check_branch
      %160 = sbr.rel (%p157) target = $region12
    $region11: #{tpu_custom_call.1} parent=5 // pred_region
      %s161 = ssub.s32 %s11, 1
      // Predicated region
      $region13: #{tpu_custom_call.1} parent=11 // pred_check
        %p162 = pneg %p58
      $region14: #{tpu_custom_call.1} parent=11 // pred_check_branch
        %164 = sbr.rel (%p162) target = $region16
      $region15: #{tpu_custom_call.1} parent=11 // pred_region
        _
      $region16: #{tpu_custom_call.1} parent=11 // pred_fallthru
        _
      // Predicated region
      $region17: #{tpu_custom_call.1} parent=11 // pred_check
        %p165 = pneg %p79
      $region18: #{tpu_custom_call.1} parent=11 // pred_check_branch
        %167 = sbr.rel (%p165) target = $region20
      $region19: #{tpu_custom_call.1} parent=11 // pred_region
        _
      $region20: #{tpu_custom_call.1} parent=11 // pred_fallthru
        _
      // Predicated region
      $region21: #{tpu_custom_call.1} parent=11 // pred_check
        %p168 = pneg %p100
      $region22: #{tpu_custom_call.1} parent=11 // pred_check_branch
        %170 = sbr.rel (%p168) target = $region24
      $region23: #{tpu_custom_call.1} parent=11 // pred_region
        _
      $region24: #{tpu_custom_call.1} parent=11 // pred_fallthru
        _
      // Predicated region
      $region25: #{tpu_custom_call.1} parent=11 // pred_check
        %p171 = pneg %p121
      $region26: #{tpu_custom_call.1} parent=11 // pred_check_branch
        %173 = sbr.rel (%p171) target = $region28
      $region27: #{tpu_custom_call.1} parent=11 // pred_region
        _
      $region28: #{tpu_custom_call.1} parent=11 // pred_fallthru
        _
    $region12: #{tpu_custom_call.1} parent=5 // pred_fallthru
      _
    %p174 = scmp.lt.s32.totalorder %s11, 2
    // Predicated region
    $region29: #{tpu_custom_call.1} parent=5 // pred_check
      %p175 = pneg %p174
    $region30: #{tpu_custom_call.1} parent=5 // pred_check_branch
      %177 = sbr.rel (%p175) target = $region32
    $region31: #{tpu_custom_call.1} parent=5 // pred_region
      // Predicated region
      $region33: #{tpu_custom_call.1} parent=31 // pred_check
        %p178 = pneg %p31
      $region34: #{tpu_custom_call.1} parent=31 // pred_check_branch
        %180 = sbr.rel (%p178) target = $region36
      $region35: #{tpu_custom_call.1} parent=31 // pred_region
        %p181 = scmp.lt.s32.totalorder %s11, 1
        %s182 = scalar_select %p181, %s11, 1
        %s183 = smul.addr %s182, 4
        %s184 = smul.addr %s183, 8
        %s185 = scalar_lea.vmem %s0, %s184
      $region36: #{tpu_custom_call.1} parent=31 // pred_fallthru
        _
    $region32: #{tpu_custom_call.1} parent=5 // pred_fallthru
      _
    %p186 = scmp.le.s32.totalorder 1, %s11
    %p187 = scmp.lt.s32.totalorder %s11, 3
    %p188 = pnand %p186, %p187
    %p189 = pneg %p188
    // Predicated region
    $region37: #{tpu_custom_call.1} parent=5 // pred_check
      _
    $region38: #{tpu_custom_call.1} parent=5 // pred_check_branch
      %191 = sbr.rel (%p188) target = $region40
    $region39: #{tpu_custom_call.1} parent=5 // pred_region
      %s192 = ssub.s32 %s11, 1
      %p193 = scmp.lt.s32.totalorder %s16, 1
      %s194 = scalar_select %p193, %s16, 1
      %s195 = smul.addr %s194, 4
      %s196 = smul.addr %s195, 8
      %s197 = scalar_lea.vmem %s0, %s196
      %p198 = pneg %p37
      %p199 = pneg %p34
      %p200 = pneg %p58
      %p201 = pneg %p55
      %p202 = pneg %p79
      %p203 = pneg %p76
      %p204 = pneg %p100
      %p205 = pneg %p97
      %p206 = pneg %p121
      %p207 = pneg %p118
      %p208 = pneg %p147
      %p209 = pneg %p144
      %p210 = scmp.lt.s32.totalorder %s16, 1
      %s211 = scalar_select %p210, %s16, 1
      %s212 = smul.addr %s211, 4
      %s213 = smul.addr %s212, 8
      %s214 = scalar_lea.vmem %s5, %s213
      %p215 = scmp.lt.s32.totalorder %s16, 1
      %s216 = scalar_select %p215, %s16, 1
      %s217 = smul.addr %s216, 4
      %s218 = smul.addr %s217, 8
      %s219 = scalar_lea.vmem %s0, %s218
      %p220 = scmp.lt.s32.totalorder %s16, 1
      %s221 = scalar_select %p220, %s16, 1
      %s222 = smul.addr %s221, 4
      %s223 = smul.addr %s222, 8
      %s224 = scalar_lea.vmem %s5, %s223
      %v225 = vld [vmem:[%s219] sm:$0xff]
      %v226 = vld [vmem:[%s219 + $0x8] sm:$0xff]
      %v227 = vld [vmem:[%s219 + $0x10] sm:$0xff]
      %v228 = vld [vmem:[%s219 + $0x18] sm:$0xff]
      %vm229 = vcmask 130048
      %v230 = vsel %vm229, %v225, 0.0
      %231 = vadd.xlane.f32.xlu0 %v230
      %v232 = vpop.xlane.xlu0 %231
      %v233 = vsel %vm229, %v226, 0.0
      %234 = vadd.xlane.f32.xlu0 %v233
      %v235 = vpop.xlane.xlu0 %234
      %v236 = vsel %vm229, %v227, 0.0
      %237 = vadd.xlane.f32.xlu0 %v236
      %v238 = vpop.xlane.xlu0 %237
      %v239 = vsel %vm229, %v228, 0.0
      %240 = vadd.xlane.f32.xlu0 %v239
      %v241 = vpop.xlane.xlu0 %240
      %v242 = vadd.f32 %v232, 0.0
      %v243 = vadd.f32 %v235, 0.0
      %v244 = vadd.f32 %v238, 0.0
      %v245 = vadd.f32 %v241, 0.0
      %v246 = vmul.f32 %v242, 0.0625
      %v247 = vmul.f32 %v243, 0.0625
      %v248 = vmul.f32 %v244, 0.0625
      %v249 = vmul.f32 %v245, 0.0625
      %v250 = vld [vmem:[%s1] sm:$0xff]
      %v251 = vld [vmem:[%s1 + $0x8] sm:$0xff]
      %v252 = vld [vmem:[%s1 + $0x10] sm:$0xff]
      %v253 = vld [vmem:[%s1 + $0x18] sm:$0xff]
      %v254 = vld [vmem:[%s2] sm:$0x1]
      %v259 = vlaneseq
      %v260 = vand.u32 %v259, 127
      %v261 = vlaneseq
      %v262 = vshrl.u32 %v261, 7
      %v263 = vsub.s32 %v260, %v262
      %v264 = vrot.slane %v246, %v263
      %v265 = vadd.s32 %v260, 4294967288
      %v266 = vlaneseq
      %v267 = vshrl.u32 %v266, 7
      %v268 = vsub.s32 %v265, %v267
      %v269 = vrot.slane %v247, %v268
      %vm270 = vcmask 130112
      %v271 = vsel %vm270, %v269, %v264
      %v272 = vadd.s32 %v260, 4294967280
      %v273 = vlaneseq
      %v274 = vshrl.u32 %v273, 7
      %v275 = vsub.s32 %v272, %v274
      %v276 = vrot.slane %v248, %v275
      %vm277 = vcmask 195712
      %v278 = vsel %vm277, %v276, %v271
      %v279 = vadd.s32 %v260, 4294967272
      %v280 = vlaneseq
      %v281 = vshrl.u32 %v280, 7
      %v282 = vsub.s32 %v279, %v281
      %v283 = vrot.slane %v249, %v282
      %vm284 = vcmask 261312
      %v285 = vsel %vm284, %v283, %v278
      %vm286 = vcmask 261120
      %v287 = vsel %vm286, %v285, 0
      %289 = vmatprep.subr.mxu0 0.0
      %290 = vmatpush1.msra.mxu0 %v250
      %291 = vmatprep.subr.mxu0 0.0
      %292 = vmatpush1.msra.mxu0 %v251
      %293 = vmatprep.subr.mxu0 0.0
      %294 = vmatpush1.msra.mxu0 %v252
      %295 = vmatprep.subr.mxu0 0.0
      %296 = vmatpush1.msra.mxu0 %v253
      %297 = vmatprep.subr.mxu0 0.0
      %298 = vmatpush1.msra.mxu0 0.0
      %299 = vmatprep.subr.mxu0 0.0
      %300 = vmatpush1.msra.mxu0 0.0
      %301 = vmatprep.subr.mxu0 0.0
      %302 = vmatpush1.msra.mxu0 0.0
      %303 = vmatprep.subr.mxu0 0.0
      %304 = vmatpush1.msra.mxu0 0.0
      %305 = vmatprep.subr.mxu0 0.0
      %306 = vmatpush1.msra.mxu0 0.0
      %307 = vmatprep.subr.mxu0 0.0
      %308 = vmatpush1.msra.mxu0 0.0
      %309 = vmatprep.subr.mxu0 0.0
      %310 = vmatpush1.msra.mxu0 0.0
      %311 = vmatprep.subr.mxu0 0.0
      %312 = vmatpush1.msra.mxu0 0.0
      %313 = vmatprep.subr.mxu0 0.0
      %314 = vmatpush1.msra.mxu0 0.0
      %315 = vmatprep.subr.mxu0 0.0
      %316 = vmatpush1.msra.mxu0 0.0
      %317 = vmatprep.subr.mxu0 0.0
      %318 = vmatpush1.msra.mxu0 0.0
      %319 = vmatprep.subr.mxu0 0.0
      %320 = vmatpush1.msra.mxu0 0.0
      %321 = vmatprep.subr.mxu0 0.0
      %322 = vmatpush1.msra.mxu0 0.0
      %323 = vmatprep.subr.mxu0 0.0
      %324 = vmatpush1.msra.mxu0 0.0
      %325 = vmatprep.subr.mxu0 0.0
      %326 = vmatpush1.msra.mxu0 0.0
      %327 = vmatprep.subr.mxu0 0.0
      %328 = vmatpush1.msra.mxu0 0.0
      %329 = vmatprep.subr.mxu0 0.0
      %330 = vmatpush1.msra.mxu0 0.0
      %331 = vmatprep.subr.mxu0 0.0
      %332 = vmatpush1.msra.mxu0 0.0
      %333 = vmatprep.subr.mxu0 0.0
      %334 = vmatpush1.msra.mxu0 0.0
      %335 = vmatprep.subr.mxu0 0.0
      %336 = vmatpush1.msra.mxu0 0.0
      %337 = vmatprep.subr.mxu0 0.0
      %338 = vmatpush1.msra.mxu0 0.0
      %339 = vmatprep.subr.mxu0 0.0
      %340 = vmatpush1.msra.mxu0 0.0
      %341 = vmatprep.subr.mxu0 0.0
      %342 = vmatpush1.msra.mxu0 0.0
      %343 = vmatprep.subr.mxu0 0.0
      %344 = vmatpush1.msra.mxu0 0.0
      %345 = vmatprep.subr.mxu0 0.0
      %346 = vmatpush1.msra.mxu0 0.0
      %347 = vmatprep.subr.mxu0 0.0
      %348 = vmatpush1.msra.mxu0 0.0
      %349 = vmatprep.subr.mxu0 0.0
      %350 = vmatpush1.msra.mxu0 0.0
      %351 = vmatprep.subr.mxu0 0.0
      %352 = vmatpush1.msra.mxu0 0.0
      %353 = vmatprep.mubr.f32.mxu0 0.0
      %354 = vmatmul.mubr.f32.gmra.mrb[0].mxu0 %v287
      %v355 = vpop.f32.mrb[0].mxu0
      %v356 = vadd.f32 %v254, %v355
      %v357 = vpop.f32.mrb[0].mxu0
      %358 = vdwg.mxu0
      %v359 = vmax.f32 %v356, 0.0
      %v360 = vld [vmem:[%s3] sm:$0xf]
      %v361 = vld [vmem:[%s4] sm:$0x1]
      %vm362 = vcmask 31744
      %v364 = vsel %vm362, %v359, 0
      %vm366 = vcmask 1043456
      %v368 = vsel %vm366, %v360, 0
      %370 = vmatprep.subr.mxu0 0.0
      %371 = vmatpush1.msra.mxu0 %v368
      %372 = vmatprep.subr.mxu0 0.0
      %373 = vmatpush1.msra.mxu0 0.0
      %374 = vmatprep.subr.mxu0 0.0
      %375 = vmatpush1.msra.mxu0 0.0
      %376 = vmatprep.subr.mxu0 0.0
      %377 = vmatpush1.msra.mxu0 0.0
      %378 = vmatprep.subr.mxu0 0.0
      %379 = vmatpush1.msra.mxu0 0.0
      %380 = vmatprep.subr.mxu0 0.0
      %381 = vmatpush1.msra.mxu0 0.0
      %382 = vmatprep.subr.mxu0 0.0
      %383 = vmatpush1.msra.mxu0 0.0
      %384 = vmatprep.subr.mxu0 0.0
      %385 = vmatpush1.msra.mxu0 0.0
      %386 = vmatprep.subr.mxu0 0.0
      %387 = vmatpush1.msra.mxu0 0.0
      %388 = vmatprep.subr.mxu0 0.0
      %389 = vmatpush1.msra.mxu0 0.0
      %390 = vmatprep.subr.mxu0 0.0
      %391 = vmatpush1.msra.mxu0 0.0
      %392 = vmatprep.subr.mxu0 0.0
      %393 = vmatpush1.msra.mxu0 0.0
      %394 = vmatprep.subr.mxu0 0.0
      %395 = vmatpush1.msra.mxu0 0.0
      %396 = vmatprep.subr.mxu0 0.0
      %397 = vmatpush1.msra.mxu0 0.0
      %398 = vmatprep.subr.mxu0 0.0
      %399 = vmatpush1.msra.mxu0 0.0
      %400 = vmatprep.subr.mxu0 0.0
      %401 = vmatpush1.msra.mxu0 0.0
      %402 = vmatprep.subr.mxu0 0.0
      %403 = vmatpush1.msra.mxu0 0.0
      %404 = vmatprep.subr.mxu0 0.0
      %405 = vmatpush1.msra.mxu0 0.0
      %406 = vmatprep.subr.mxu0 0.0
      %407 = vmatpush1.msra.mxu0 0.0
      %408 = vmatprep.subr.mxu0 0.0
      %409 = vmatpush1.msra.mxu0 0.0
      %410 = vmatprep.subr.mxu0 0.0
      %411 = vmatpush1.msra.mxu0 0.0
      %412 = vmatprep.subr.mxu0 0.0
      %413 = vmatpush1.msra.mxu0 0.0
      %414 = vmatprep.subr.mxu0 0.0
      %415 = vmatpush1.msra.mxu0 0.0
      %416 = vmatprep.subr.mxu0 0.0
      %417 = vmatpush1.msra.mxu0 0.0
      %418 = vmatprep.subr.mxu0 0.0
      %419 = vmatpush1.msra.mxu0 0.0
      %420 = vmatprep.subr.mxu0 0.0
      %421 = vmatpush1.msra.mxu0 0.0
      %422 = vmatprep.subr.mxu0 0.0
      %423 = vmatpush1.msra.mxu0 0.0
      %424 = vmatprep.subr.mxu0 0.0
      %425 = vmatpush1.msra.mxu0 0.0
      %426 = vmatprep.subr.mxu0 0.0
      %427 = vmatpush1.msra.mxu0 0.0
      %428 = vmatprep.subr.mxu0 0.0
      %429 = vmatpush1.msra.mxu0 0.0
      %430 = vmatprep.subr.mxu0 0.0
      %431 = vmatpush1.msra.mxu0 0.0
      %432 = vmatprep.subr.mxu0 0.0
      %433 = vmatpush1.msra.mxu0 0.0
      %434 = vmatprep.mubr.f32.mxu0 0.0
      %435 = vmatmul.mubr.f32.gmra.mrb[0].mxu0 %v364
      %v436 = vpop.f32.mrb[0].mxu0
      %v437 = vadd.f32 %v361, %v436
      %v438 = vpop.f32.mrb[0].mxu0
      %439 = vdwg.mxu0
      %v440 = vxor.u32 %v437, 2147483648
      %v441 = vmul.f32 %v440, 1.442695
      %v442 = vpow.pop %v441
      %v443 = vadd.f32 %v442, 1.0
      %v444 = vrcp.pop %v443
      %v445 = vmul.f32 1.0, %v444
      %v446 = vlaneseq
      %v447 = vshrl.u32 %v446, 7
      %v448 = vsub.s32 0, %v447
      %v449 = vrot.slane %v445, %v448
      %451 = vbcast.lane.b32.xlu0 %v449, 256
      %v452 = vpop.permute.xlu0 %451
      %s454 = sor.u32 256, 8
      %455 = vbcast.lane.b32.xlu0 %v449, %s454
      %v456 = vpop.permute.xlu0 %455
      %s458 = sor.u32 256, 16
      %459 = vbcast.lane.b32.xlu0 %v449, %s458
      %v460 = vpop.permute.xlu0 %459
      %s462 = sor.u32 256, 24
      %463 = vbcast.lane.b32.xlu0 %v449, %s462
      %v464 = vpop.permute.xlu0 %463
      %v465 = vmul.f32 %v225, %v452
      %v466 = vmul.f32 %v226, %v456
      %v467 = vmul.f32 %v227, %v460
      %v468 = vmul.f32 %v228, %v464
      %469 = vst.msk [vmem:[%s224] sm:$0xff] %vm229, %v465
      %470 = vst.msk [vmem:[%s224 + $0x8] sm:$0xff] %vm229, %v466
      %471 = vst.msk [vmem:[%s224 + $0x10] sm:$0xff] %vm229, %v467
      %472 = vst.msk [vmem:[%s224 + $0x18] sm:$0xff] %vm229, %v468
      %p473 = scmp.lt.s32.totalorder %s16, 1
      %s474 = scalar_select %p473, %s16, 1
      %s475 = smul.addr %s474, 4
      %s476 = smul.addr %s475, 8
      %s477 = scalar_lea.vmem %s5, %s476
      // Predicated region
      $region41: #{tpu_custom_call.1} parent=39 // pred_check
        %p478 = pneg %p144
      $region42: #{tpu_custom_call.1} parent=39 // pred_check_branch
        %480 = sbr.rel (%p478) target = $region44
      $region43: #{tpu_custom_call.1} parent=39 // pred_region
        _
      $region44: #{tpu_custom_call.1} parent=39 // pred_fallthru
        _
    $region40: #{tpu_custom_call.1} parent=5 // pred_fallthru
      _
    %p481 = scmp.le.s32.totalorder 2, %s11
    // Predicated region
    $region45: #{tpu_custom_call.1} parent=5 // pred_check
      %p482 = pneg %p481
    $region46: #{tpu_custom_call.1} parent=5 // pred_check_branch
      %484 = sbr.rel (%p482) target = $region48
    $region47: #{tpu_custom_call.1} parent=5 // pred_region
      %s485 = ssub.s32 %s11, 2
      // Predicated region
      $region49: #{tpu_custom_call.1} parent=47 // pred_check
        %p486 = pneg %p150
      $region50: #{tpu_custom_call.1} parent=47 // pred_check_branch
        %488 = sbr.rel (%p486) target = $region52
      $region51: #{tpu_custom_call.1} parent=47 // pred_region
        %p489 = scmp.lt.s32.totalorder %s17, 1
        %s490 = scalar_select %p489, %s17, 1
        %s491 = smul.addr %s490, 4
        %s492 = smul.addr %s491, 8
        %s493 = scalar_lea.vmem %s5, %s492
      $region52: #{tpu_custom_call.1} parent=47 // pred_fallthru
        _
    $region48: #{tpu_custom_call.1} parent=5 // pred_fallthru
      _
  $region6: #{tpu_custom_call.1} parent=0 // loop_footer
    %s15 = sadd.s32 1, %s11
  $region7: #{tpu_custom_call.1} parent=0 // loop_footer_branch
    %10 = sbr.rel target = $region3
  $region8: #{tpu_custom_call.1} parent=0 // loop_exit
    _

</llo_original>
